<compile_context>
chip_gen: v5e
topology: v5e:2x2
jax: 0.10.0
libtpu: 0.0.40
codegen_flags: <defaults>
</compile_context>

<pallas_src>
import jax
import jax.numpy as jnp
import numpy as np
from jax.experimental import pallas as pl
from jax.experimental.pallas import tpu as pltpu

NODE_TILE = 8  # destination nodes per grid step (sublane-aligned)


# --------------------------------------------------------------------------- #
# Kernels
# --------------------------------------------------------------------------- #
def _proj_kernel(pos_ref, w1s_ref, w1d_ref, w2d_ref, a1_ref, b1_ref, b2_ref):
    """Node-space projections of the first Linear layers (project-then-gather)."""
    pos = pos_ref[...]
    a1_ref[...] = jnp.dot(pos, w1s_ref[...], preferred_element_type=jnp.float32)
    b1_ref[...] = jnp.dot(pos, w1d_ref[...], preferred_element_type=jnp.float32)
    b2_ref[...] = jnp.dot(pos, w2d_ref[...], preferred_element_type=jnp.float32)


def _message_max_tile(a_full_ref, b_dst_ref, src_oh_ref, emask_ref, hasedge_ref,
                      b1_ref, w2_ref, b2_ref):
    """One PointNetLayer for one tile of destination nodes.

    a_full : [N, H1]      node projection, gathered at edge sources
    b_dst  : [NT, H1]     node projection of this tile's destination nodes
    src_oh : [NT*DEG, N]  bf16 one-hot of edge sources (all-zero rows for padding)
    emask  : [NT*DEG, 1]  1.0 for real edges, 0.0 for padded slots
    hasedge: [NT, 1]      1.0 iff the node has at least one incoming edge
    returns relu(max-aggregated messages): [NT, H2]
    """
    nt, h1 = b_dst_ref.shape
    ep = src_oh_ref.shape[0]
    deg = ep // nt

    # Gather A[src] for every (padded) incoming edge of the tile.
    # bf16 x bf16 MXU matmul with f32 accumulation; one-hot rows are exact in bf16.
    gathered = jnp.dot(src_oh_ref[...], a_full_ref[...].astype(jnp.bfloat16),
                       preferred_element_type=jnp.float32)            # [ep, h1]

    # First Linear (already applied in node space): A[src] - B[dst] + b1, then ReLU.
    pre = (gathered.reshape(nt, deg, h1)
           - b_dst_ref[...][:, None, :]
           + b1_ref[...][None, :, :])
    hid = jnp.maximum(pre, 0.0).reshape(ep, h1)

    # Second Linear of the edge MLP (kept f32; could be bf16 on v6e/v7x).
    msg = jnp.dot(hid, w2_ref[...], preferred_element_type=jnp.float32) + b2_ref[...]
    h2 = msg.shape[-1]

    # Segment max over each node's incoming edges (aggr='max'); isolated nodes -> 0.
    msg = jnp.where(emask_ref[...] > 0.5, msg, jnp.float32(-3.0e38))
    agg = jnp.max(msg.reshape(nt, deg, h2), axis=1)                    # [nt, h2]
    agg = jnp.where(hasedge_ref[...] > 0.5, agg, 0.0)
    return jnp.maximum(agg, 0.0)                                       # relu in forward


def _conv_kernel(a_full_ref, b_dst_ref, src_oh_ref, emask_ref, hasedge_ref,
                 b1_ref, w2_ref, b2_ref, out_ref):
    out_ref[...] = _message_max_tile(a_full_ref, b_dst_ref, src_oh_ref, emask_ref,
                                     hasedge_ref, b1_ref, w2_ref, b2_ref)


def _conv_fused_kernel(a_full_ref, b_dst_ref, src_oh_ref, emask_ref, hasedge_ref,
                       b1_ref, w2_ref, b2_ref, wnext_ref, bnext_ref, anext_ref):
    """conv1 tile + fused node projection for conv2: A2 = h1 @ W21a + B2."""
    h1 = _message_max_tile(a_full_ref, b_dst_ref, src_oh_ref, emask_ref, hasedge_ref,
                           b1_ref, w2_ref, b2_ref)
    anext_ref[...] = (jnp.dot(h1, wnext_ref[...], preferred_element_type=jnp.float32)
                      + bnext_ref[...])


# --------------------------------------------------------------------------- #
# Host-side helpers
# --------------------------------------------------------------------------- #
def _round_up(x, m):
    return (x + m - 1) // m * m


def _nbytes(*arrays):
    return int(sum(a.size * a.dtype.itemsize for a in arrays))


def _build_edge_layout(edge_index, num_nodes, node_tile):
    """Group incoming edges by destination into a padded [N, DEG_MAX] table."""
    src = np.asarray(edge_index[0], dtype=np.int64)
    dst = np.asarray(edge_index[1], dtype=np.int64)
    n_pad = _round_up(num_nodes, node_tile)

    deg = np.zeros(n_pad, np.int64)
    np.add.at(deg, dst, 1)
    deg_max = _round_up(max(int(deg.max()), 1), 8)

    src_pad = np.zeros((n_pad, deg_max), np.int64)
    emask = np.zeros((n_pad, deg_max), np.float32)
    fill = np.zeros(n_pad, np.int64)
    for s, d in zip(src, dst):
        k = fill[d]
        src_pad[d, k] = s
        emask[d, k] = 1.0
        fill[d] += 1

    # One-hot of edge sources; padded slots get an all-zero row.
    # NOTE: at large N this dense [E_pad, N] one-hot should become an index/DMA gather;
    # for these sizes the single lane-dense bf16 matmul is the fastest exact encoding.
    src_oh = np.zeros((n_pad * deg_max, n_pad), np.float32)
    rows = np.arange(n_pad * deg_max)
    src_oh[rows, src_pad.reshape(-1)] = emask.reshape(-1)

    has_edge = (deg > 0).astype(np.float32).reshape(n_pad, 1)
    return (jnp.asarray(src_oh, jnp.bfloat16),
            jnp.asarray(emask.reshape(n_pad * deg_max, 1)),
            jnp.asarray(has_edge),
            n_pad, deg_max)


def init_linear(key, fan_in, fan_out):
    # PyTorch nn.Linear default init: U(-1/sqrt(fan_in), +1/sqrt(fan_in)).
    k1, k2 = jax.random.split(key)
    bound = 1.0 / np.sqrt(fan_in)
    w = jax.random.uniform(k1, (fan_in, fan_out), jnp.float32, -bound, bound)
    b = jax.random.uniform(k2, (1, fan_out), jnp.float32, -bound, bound)
    return w, b


def make_params(key, in_num_feature=3, hidden=32, out=32):
    ks = jax.random.split(key, 4)
    w11, b11 = init_linear(ks[0], in_num_feature + 3, hidden)  # conv1.mlp[0]
    w12, b12 = init_linear(ks[1], hidden, hidden)              # conv1.mlp[2]
    w21, b21 = init_linear(ks[2], hidden + 3, out)             # conv2.mlp[0]
    w22, b22 = init_linear(ks[3], out, out)                    # conv2.mlp[2]
    return (w11, b11, w12, b12, w21, b21, w22, b22)


# --------------------------------------------------------------------------- #
# Forward
# --------------------------------------------------------------------------- #
def pointnet_forward(pos, edge_index, batch, params, node_tile=NODE_TILE):
    # `batch` is accepted for parity with the PyTorch module; its forward ignores it.
    del batch
    (w11, b11, w12, b12, w21, b21, w22, b22) = params
    n, in_dim = pos.shape
    hid = w12.shape[0]
    out_dim = w22.shape[1]
    f32 = jnp.float32

    # Host-side edge layout (the "sort edges by destination" preprocessing).
    src_oh, emask, has_edge, n_pad, deg_max = _build_edge_layout(edge_index, n, node_tile)
    pos_p = jnp.zeros((n_pad, in_dim), f32).at[:n].set(pos.astype(f32))

    # Static weight split: concat([h_j, pos_j - pos_i]) @ W1 == h_j@W1a + (pos_j-pos_i)@W1b.
    w11a, w11b = w11[:in_dim], w11[in_dim:]
    w21a, w21b = w21[:hid], w21[hid:]

    vmem = pl.BlockSpec(memory_space=pltpu.MemorySpace.VMEM)

    # ---- node-space projections of the first Linear layers (computed once) -------------
    proj_a1, proj_b1, proj_b2 = pl.pallas_call(
        _proj_kernel,
        out_shape=(jax.ShapeDtypeStruct((n_pad, hid), f32),
                   jax.ShapeDtypeStruct((n_pad, hid), f32),
                   jax.ShapeDtypeStruct((n_pad, out_dim), f32)),
        in_specs=[vmem] * 4,
        out_specs=(vmem, vmem, vmem),
    )(pos_p, w11a + w11b, w11b, w21b)

    num_tiles = n_pad // node_tile
    et = node_tile * deg_max                      # padded edges per node tile
    ep_total = n_pad * deg_max
    grid = (num_tiles,)
    cparams = pltpu.CompilerParams(
        dimension_semantics=("parallel",),        # node tiles are independent -> megacore
        vmem_limit_bytes=32 * 1024 * 1024)

    def full_spec(arr):
        return pl.BlockSpec(arr.shape, lambda i: (0, 0))

    def tile_spec(cols):
        return pl.BlockSpec((node_tile, cols), lambda i: (i, 0))

    edge_tile_spec = pl.BlockSpec((et, n_pad), lambda i: (i, 0))
    emask_spec = pl.BlockSpec((et, 1), lambda i: (i, 0))

    # ---- conv1 (+ fused conv2 node projection) ------------------------------------------
    a2 = pl.pallas_call(
        _conv_fused_kernel,
        out_shape=jax.ShapeDtypeStruct((n_pad, out_dim), f32),
        grid=grid,
        in_specs=[
            full_spec(proj_a1),          # A1: gathered at sources, VMEM-resident
            tile_spec(hid),              # B1 tile (destination nodes)
            edge_tile_spec,              # src one-hot tile (bf16)
            emask_spec,                  # edge-validity mask
            tile_spec(1),                # has_edge
            full_spec(b11), full_spec(w12), full_spec(b12),
            full_spec(w21a),             # fused next-layer projection weight
            tile_spec(out_dim),          # B2 tile
        ],
        out_specs=pl.BlockSpec((node_tile, out_dim), lambda i: (i, 0)),
        compiler_params=cparams,
        cost_estimate=pl.CostEstimate(
            flops=2 * ep_total * n_pad * hid + 2 * ep_total * hid * hid
            + 2 * n_pad * hid * out_dim,
            transcendentals=0,
            bytes_accessed=_nbytes(proj_a1, proj_b1, src_oh, emask, has_edge,
                                   b11, w12, b12, w21a, proj_b2) + n_pad * out_dim * 4),
    )(proj_a1, proj_b1, src_oh, emask, has_edge, b11, w12, b12, w21a, proj_b2)

    # ---- conv2 ---------------------------------------------------------------------------
    out_p = pl.pallas_call(
        _conv_kernel,
        out_shape=jax.ShapeDtypeStruct((n_pad, out_dim), f32),
        grid=grid,
        in_specs=[
            full_spec(a2),               # A2: gathered at sources, VMEM-resident
            tile_spec(out_dim),          # B2 tile
            edge_tile_spec,
            emask_spec,
            tile_spec(1),
            full_spec(b21), full_spec(w22), full_spec(b22),
        ],
        out_specs=pl.BlockSpec((node_tile, out_dim), lambda i: (i, 0)),
        compiler_params=cparams,
        cost_estimate=pl.CostEstimate(
            flops=2 * ep_total * n_pad * out_dim + 2 * ep_total * out_dim * out_dim,
            transcendentals=0,
            bytes_accessed=_nbytes(a2, proj_b2, src_oh, emask, has_edge,
                                   b21, w22, b22) + n_pad * out_dim * 4),
    )(a2, proj_b2, src_oh, emask, has_edge, b21, w22, b22)

    return out_p[:n]


def pointnet_reference(pos, edge_index, params):
    # Pure-JAX (f32) reference reproducing the PyTorch forward.
    (w11, b11, w12, b12, w21, b21, w22, b22) = params
    n = pos.shape[0]
    src, dst = edge_index[0], edge_index[1]

    def layer(h, w1, b1, w2, b2):
        ef = jnp.concatenate([h[src], pos[src] - pos[dst]], axis=-1)
        m = jnp.maximum(ef @ w1 + b1, 0.0) @ w2 + b2
        agg = jnp.full((n, m.shape[-1]), -3.0e38, jnp.float32)
        agg = agg.at[dst].max(m)
        has = jnp.zeros((n,), bool).at[dst].set(True)
        agg = jnp.where(has[:, None], agg, 0.0)
        return jnp.maximum(agg, 0.0)

    h1 = layer(pos, w11, b11, w12, b12)
    return layer(h1, w21, b21, w22, b22)


if __name__ == "__main__":
    key = jax.random.PRNGKey(0)
    k_pos, k_edge, k_param = jax.random.split(key, 3)

    N, E, HID, OUT = 64, 256, 32, 32
    pos = jax.random.normal(k_pos, (N, 3), jnp.float32)

    # Deterministic edges: a ring (every node gets an incoming edge) + random extras.
    ring_src = np.arange(N, dtype=np.int32)
    ring_dst = (ring_src + 1) % N
    extra = np.asarray(jax.random.randint(k_edge, (2, E - N), 0, N, dtype=jnp.int32))
    edge_index = jnp.asarray(
        np.concatenate([np.stack([ring_src, ring_dst]), extra], axis=1).astype(np.int32))
    batch = jnp.zeros((N,), jnp.int32)  # unused by forward (parity only)

    params = make_params(k_param, in_num_feature=3, hidden=HID, out=OUT)

    out = pointnet_forward(pos, edge_index, batch, params)
    out = jax.block_until_ready(out)

    ref = pointnet_reference(pos, edge_index, params)
    # bf16 is used only for the one-hot gather operands (a single rounding of A per edge);
    # all other arithmetic is f32, so 2e-2 tolerance is ample.
    np.testing.assert_allclose(np.asarray(out), np.asarray(ref), rtol=2e-2, atol=2e-2)
    print("KERNEL_OK")
</pallas_src>

<mosaic_0001>
module attributes {stable_mosaic.version = 11 : i64} {
  func.func @_proj_kernel(%arg0: memref<64x3xf32, #tpu.memory_space<vmem>>, %arg1: memref<3x32xf32, #tpu.memory_space<vmem>>, %arg2: memref<3x32xf32, #tpu.memory_space<vmem>>, %arg3: memref<3x32xf32, #tpu.memory_space<vmem>>, %arg4: memref<64x32xf32, #tpu.memory_space<vmem>>, %arg5: memref<64x32xf32, #tpu.memory_space<vmem>>, %arg6: memref<64x32xf32, #tpu.memory_space<vmem>>) attributes {dimension_semantics = [], scalar_prefetch = 0 : i64, scratch_operands = 0 : i64, tpu.core_type = #tpu.core_type<tc>} {
    %c0 = arith.constant 0 : index
    %c0_0 = arith.constant 0 : index
    %0 = vector.load %arg0[%c0, %c0_0] : memref<64x3xf32, #tpu.memory_space<vmem>>, vector<64x3xf32>
    %c0_1 = arith.constant 0 : index
    %c0_2 = arith.constant 0 : index
    %1 = vector.load %arg1[%c0_1, %c0_2] : memref<3x32xf32, #tpu.memory_space<vmem>>, vector<3x32xf32>
    %cst = arith.constant dense<0.000000e+00> : vector<64x32xf32>
    %2 = tpu.matmul %0, %1, %cst {dimension_numbers = #tpu.dot_dimension_numbers<[1], [0], [0], [1], [0, 0, 1, 1], [], []>} : vector<64x3xf32>, vector<3x32xf32>, vector<64x32xf32> -> vector<64x32xf32>
    %c0_3 = arith.constant 0 : index
    %c0_4 = arith.constant 0 : index
    %3 = vector.load %arg4[%c0_3, %c0_4] : memref<64x32xf32, #tpu.memory_space<vmem>>, vector<64x32xf32>
    tpu.vector_store %arg4[%c0_3, %c0_4], %2 {strides = array<i32>} : memref<64x32xf32, #tpu.memory_space<vmem>>, vector<64x32xf32>,
    %c0_5 = arith.constant 0 : index
    %c0_6 = arith.constant 0 : index
    %4 = vector.load %arg2[%c0_5, %c0_6] : memref<3x32xf32, #tpu.memory_space<vmem>>, vector<3x32xf32>
    %cst_7 = arith.constant dense<0.000000e+00> : vector<64x32xf32>
    %5 = tpu.matmul %0, %4, %cst_7 {dimension_numbers = #tpu.dot_dimension_numbers<[1], [0], [0], [1], [0, 0, 1, 1], [], []>} : vector<64x3xf32>, vector<3x32xf32>, vector<64x32xf32> -> vector<64x32xf32>
    %c0_8 = arith.constant 0 : index
    %c0_9 = arith.constant 0 : index
    %6 = vector.load %arg5[%c0_8, %c0_9] : memref<64x32xf32, #tpu.memory_space<vmem>>, vector<64x32xf32>
    tpu.vector_store %arg5[%c0_8, %c0_9], %5 {strides = array<i32>} : memref<64x32xf32, #tpu.memory_space<vmem>>, vector<64x32xf32>,
    %c0_10 = arith.constant 0 : index
    %c0_11 = arith.constant 0 : index
    %7 = vector.load %arg3[%c0_10, %c0_11] : memref<3x32xf32, #tpu.memory_space<vmem>>, vector<3x32xf32>
    %cst_12 = arith.constant dense<0.000000e+00> : vector<64x32xf32>
    %8 = tpu.matmul %0, %7, %cst_12 {dimension_numbers = #tpu.dot_dimension_numbers<[1], [0], [0], [1], [0, 0, 1, 1], [], []>} : vector<64x3xf32>, vector<3x32xf32>, vector<64x32xf32> -> vector<64x32xf32>
    %c0_13 = arith.constant 0 : index
    %c0_14 = arith.constant 0 : index
    %9 = vector.load %arg6[%c0_13, %c0_14] : memref<64x32xf32, #tpu.memory_space<vmem>>, vector<64x32xf32>
    tpu.vector_store %arg6[%c0_13, %c0_14], %8 {strides = array<i32>} : memref<64x32xf32, #tpu.memory_space<vmem>>, vector<64x32xf32>,
    return
  }
}

</mosaic_0001>

<llo_original>
// kernel: tpu_custom_call.1
$region0: #{tpu_custom_call.1}
  #allocation0 [shape = 'u32[]', space=smem, size = 0x4, offset = 0x4, fixed_abs, tag = 'smem constant byte address 0x4 - core index']
  #allocation1 [shape = 'u32[72,128]{1,0:T(1,128)}', space=vmem, size = 0x9000, scoped, tag = 'internal scratch']
  %s0 = inlined_call_operand.vmem [shape: f32[64,3], index: 0, kind: input, shape index: {}]
  %s1 = inlined_call_operand.vmem [shape: f32[3,32], index: 1, kind: input, shape index: {}]
  %s2 = inlined_call_operand.vmem [shape: f32[3,32], index: 2, kind: input, shape index: {}]
  %s3 = inlined_call_operand.vmem [shape: f32[3,32], index: 3, kind: input, shape index: {}]
  %s4 = inlined_call_operand.vmem [shape: f32[64,32], index: 4, kind: output, shape index: {0}]
  %s5 = inlined_call_operand.vmem [shape: f32[64,32], index: 5, kind: output, shape index: {1}]
  %s6 = inlined_call_operand.vmem [shape: f32[64,32], index: 6, kind: output, shape index: {2}]
  %7 = xla_tuple %s4, %s5, %s6
  %s8 = sld [smem:[#allocation0]]
  $region42: #{tpu_custom_call.1} parent=0
    _
  %s10 = ssub.s32 1, %s8
  %s11 = scalar_select 0, %s10, %s8
  // Predicated region
  $region2: #{tpu_custom_call.1} parent=0 // pred_check
    _
  $region3: #{tpu_custom_call.1} parent=0 // pred_check_branch
    %13 = sbr.rel (0) target = $region5
  $region4: #{tpu_custom_call.1} parent=0 // pred_region
    _
  $region5: #{tpu_custom_call.1} parent=0 // pred_fallthru
    _
  // Predicated region
  $region6: #{tpu_custom_call.1} parent=0 // pred_check
    _
  $region7: #{tpu_custom_call.1} parent=0 // pred_check_branch
    %15 = sbr.rel (0) target = $region9
  $region8: #{tpu_custom_call.1} parent=0 // pred_region
    _
  $region9: #{tpu_custom_call.1} parent=0 // pred_fallthru
    _
  // Predicated region
  $region10: #{tpu_custom_call.1} parent=0 // pred_check
    _
  $region11: #{tpu_custom_call.1} parent=0 // pred_check_branch
    %17 = sbr.rel (0) target = $region13
  $region12: #{tpu_custom_call.1} parent=0 // pred_region
    _
  $region13: #{tpu_custom_call.1} parent=0 // pred_fallthru
    _
  // Predicated region
  $region14: #{tpu_custom_call.1} parent=0 // pred_check
    _
  $region15: #{tpu_custom_call.1} parent=0 // pred_check_branch
    %19 = sbr.rel (0) target = $region17
  $region16: #{tpu_custom_call.1} parent=0 // pred_region
    _
  $region17: #{tpu_custom_call.1} parent=0 // pred_fallthru
    _
  %v20 = vld [vmem:[%s0] sm:$0xff]
  %v21 = vld [vmem:[%s0 + $0x8] sm:$0xff]
  %v22 = vld [vmem:[%s0 + $0x10] sm:$0xff]
  %v23 = vld [vmem:[%s0 + $0x18] sm:$0xff]
  %v24 = vld [vmem:[%s0 + $0x20] sm:$0xff]
  %v25 = vld [vmem:[%s0 + $0x28] sm:$0xff]
  %v26 = vld [vmem:[%s0 + $0x30] sm:$0xff]
  %v27 = vld [vmem:[%s0 + $0x38] sm:$0xff]
  %v28 = vld [vmem:[%s1] sm:$0x7]
  %vm29 = vcmask 23552
  %v31 = vsel %vm29, %v20, 0
  %v34 = vsel %vm29, %v21, 0
  %v37 = vsel %vm29, %v22, 0
  %v40 = vsel %vm29, %v23, 0
  %v43 = vsel %vm29, %v24, 0
  %v46 = vsel %vm29, %v25, 0
  %v49 = vsel %vm29, %v26, 0
  %v52 = vsel %vm29, %v27, 0
  %vm54 = vcmask 1042432
  %v56 = vsel %vm54, %v28, 0
  %58 = vmatpush.msra.mxu0 0.0
  %59 = vmatpush.msra.mxu0 0.0
  %60 = vmatpush.msra.mxu0 0.0
  %61 = vmatpush.msra.mxu0 0.0
  %62 = vmatpush.msra.mxu0 0.0
  %63 = vmatpush.msra.mxu0 0.0
  %64 = vmatpush.msra.mxu0 0.0
  %65 = vmatpush.msra.mxu0 0.0
  %66 = vmatpush.msra.mxu0 0.0
  %67 = vmatpush.msra.mxu0 0.0
  %68 = vmatpush.msra.mxu0 0.0
  %69 = vmatpush.msra.mxu0 0.0
  %70 = vmatpush.msra.mxu0 0.0
  %71 = vmatpush.msra.mxu0 0.0
  %72 = vmatpush.msra.mxu0 0.0
  %73 = vmatpush.msra.mxu0 %v56
  %74 = vmatmul.f32.gmra.mxu0 %v31
  %v75 = vpop.f32.mrf.mxu0
  %v76 = vadd.f32 0.0, %v75
  %77 = vmatmul.f32.gmra.mxu0 %v34
  %v78 = vpop.f32.mrf.mxu0
  %v79 = vadd.f32 0.0, %v78
  %80 = vmatmul.f32.gmra.mxu0 %v37
  %v81 = vpop.f32.mrf.mxu0
  %v82 = vadd.f32 0.0, %v81
  %83 = vmatmul.f32.gmra.mxu0 %v40
  %v84 = vpop.f32.mrf.mxu0
  %v85 = vadd.f32 0.0, %v84
  %86 = vmatmul.f32.gmra.mxu0 %v43
  %v87 = vpop.f32.mrf.mxu0
  %v88 = vadd.f32 0.0, %v87
  %89 = vmatmul.f32.gmra.mxu0 %v46
  %v90 = vpop.f32.mrf.mxu0
  %v91 = vadd.f32 0.0, %v90
  %92 = vmatmul.f32.gmra.mxu0 %v49
  %v93 = vpop.f32.mrf.mxu0
  %v94 = vadd.f32 0.0, %v93
  %95 = vmatmul.f32.gmra.mxu0 %v52
  %v96 = vpop.f32.mrf.mxu0
  %v97 = vadd.f32 0.0, %v96
  %98 = vdwg.mxu0
  %vm99 = vcmask 261120
  %100 = vst.msk [vmem:[%s4] sm:$0xff] %vm99, %v76
  %101 = vst.msk [vmem:[%s4 + $0x8] sm:$0xff] %vm99, %v79
  %102 = vst.msk [vmem:[%s4 + $0x10] sm:$0xff] %vm99, %v82
  %103 = vst.msk [vmem:[%s4 + $0x18] sm:$0xff] %vm99, %v85
  %104 = vst.msk [vmem:[%s4 + $0x20] sm:$0xff] %vm99, %v88
  %105 = vst.msk [vmem:[%s4 + $0x28] sm:$0xff] %vm99, %v91
  %106 = vst.msk [vmem:[%s4 + $0x30] sm:$0xff] %vm99, %v94
  %107 = vst.msk [vmem:[%s4 + $0x38] sm:$0xff] %vm99, %v97
  %v108 = vld [vmem:[%s2] sm:$0x7]
  %v110 = vsel %vm54, %v108, 0
  %112 = vmatpush.msra.mxu0 0.0
  %113 = vmatpush.msra.mxu0 0.0
  %114 = vmatpush.msra.mxu0 0.0
  %115 = vmatpush.msra.mxu0 0.0
  %116 = vmatpush.msra.mxu0 0.0
  %117 = vmatpush.msra.mxu0 0.0
  %118 = vmatpush.msra.mxu0 0.0
  %119 = vmatpush.msra.mxu0 0.0
  %120 = vmatpush.msra.mxu0 0.0
  %121 = vmatpush.msra.mxu0 0.0
  %122 = vmatpush.msra.mxu0 0.0
  %123 = vmatpush.msra.mxu0 0.0
  %124 = vmatpush.msra.mxu0 0.0
  %125 = vmatpush.msra.mxu0 0.0
  %126 = vmatpush.msra.mxu0 0.0
  %127 = vmatpush.msra.mxu0 %v110
  %128 = vmatmul.f32.gmra.mxu0 %v31
  %v129 = vpop.f32.mrf.mxu0
  %v130 = vadd.f32 0.0, %v129
  %131 = vmatmul.f32.gmra.mxu0 %v34
  %v132 = vpop.f32.mrf.mxu0
  %v133 = vadd.f32 0.0, %v132
  %134 = vmatmul.f32.gmra.mxu0 %v37
  %v135 = vpop.f32.mrf.mxu0
  %v136 = vadd.f32 0.0, %v135
  %137 = vmatmul.f32.gmra.mxu0 %v40
  %v138 = vpop.f32.mrf.mxu0
  %v139 = vadd.f32 0.0, %v138
  %140 = vmatmul.f32.gmra.mxu0 %v43
  %v141 = vpop.f32.mrf.mxu0
  %v142 = vadd.f32 0.0, %v141
  %143 = vmatmul.f32.gmra.mxu0 %v46
  %v144 = vpop.f32.mrf.mxu0
  %v145 = vadd.f32 0.0, %v144
  %146 = vmatmul.f32.gmra.mxu0 %v49
  %v147 = vpop.f32.mrf.mxu0
  %v148 = vadd.f32 0.0, %v147
  %149 = vmatmul.f32.gmra.mxu0 %v52
  %v150 = vpop.f32.mrf.mxu0
  %v151 = vadd.f32 0.0, %v150
  %152 = vdwg.mxu0
  %153 = vst.msk [vmem:[%s5] sm:$0xff] %vm99, %v130
  %154 = vst.msk [vmem:[%s5 + $0x8] sm:$0xff] %vm99, %v133
  %155 = vst.msk [vmem:[%s5 + $0x10] sm:$0xff] %vm99, %v136
  %156 = vst.msk [vmem:[%s5 + $0x18] sm:$0xff] %vm99, %v139
  %157 = vst.msk [vmem:[%s5 + $0x20] sm:$0xff] %vm99, %v142
  %158 = vst.msk [vmem:[%s5 + $0x28] sm:$0xff] %vm99, %v145
  %159 = vst.msk [vmem:[%s5 + $0x30] sm:$0xff] %vm99, %v148
  %160 = vst.msk [vmem:[%s5 + $0x38] sm:$0xff] %vm99, %v151
  %v161 = vld [vmem:[%s3] sm:$0x7]
  %v163 = vsel %vm54, %v161, 0
  %165 = vmatpush.msra.mxu0 0.0
  %166 = vmatpush.msra.mxu0 0.0
  %167 = vmatpush.msra.mxu0 0.0
  %168 = vmatpush.msra.mxu0 0.0
  %169 = vmatpush.msra.mxu0 0.0
  %170 = vmatpush.msra.mxu0 0.0
  %171 = vmatpush.msra.mxu0 0.0
  %172 = vmatpush.msra.mxu0 0.0
  %173 = vmatpush.msra.mxu0 0.0
  %174 = vmatpush.msra.mxu0 0.0
  %175 = vmatpush.msra.mxu0 0.0
  %176 = vmatpush.msra.mxu0 0.0
  %177 = vmatpush.msra.mxu0 0.0
  %178 = vmatpush.msra.mxu0 0.0
  %179 = vmatpush.msra.mxu0 0.0
  %180 = vmatpush.msra.mxu0 %v163
  %181 = vmatmul.f32.gmra.mxu0 %v31
  %v182 = vpop.f32.mrf.mxu0
  %v183 = vadd.f32 0.0, %v182
  %184 = vmatmul.f32.gmra.mxu0 %v34
  %v185 = vpop.f32.mrf.mxu0
  %v186 = vadd.f32 0.0, %v185
  %187 = vmatmul.f32.gmra.mxu0 %v37
  %v188 = vpop.f32.mrf.mxu0
  %v189 = vadd.f32 0.0, %v188
  %190 = vmatmul.f32.gmra.mxu0 %v40
  %v191 = vpop.f32.mrf.mxu0
  %v192 = vadd.f32 0.0, %v191
  %193 = vmatmul.f32.gmra.mxu0 %v43
  %v194 = vpop.f32.mrf.mxu0
  %v195 = vadd.f32 0.0, %v194
  %196 = vmatmul.f32.gmra.mxu0 %v46
  %v197 = vpop.f32.mrf.mxu0
  %v198 = vadd.f32 0.0, %v197
  %199 = vmatmul.f32.gmra.mxu0 %v49
  %v200 = vpop.f32.mrf.mxu0
  %v201 = vadd.f32 0.0, %v200
  %202 = vmatmul.f32.gmra.mxu0 %v52
  %v203 = vpop.f32.mrf.mxu0
  %v204 = vadd.f32 0.0, %v203
  %205 = vdwg.mxu0
  %206 = vst.msk [vmem:[%s6] sm:$0xff] %vm99, %v183
  %207 = vst.msk [vmem:[%s6 + $0x8] sm:$0xff] %vm99, %v186
  %208 = vst.msk [vmem:[%s6 + $0x10] sm:$0xff] %vm99, %v189
  %209 = vst.msk [vmem:[%s6 + $0x18] sm:$0xff] %vm99, %v192
  %210 = vst.msk [vmem:[%s6 + $0x20] sm:$0xff] %vm99, %v195
  %211 = vst.msk [vmem:[%s6 + $0x28] sm:$0xff] %vm99, %v198
  %212 = vst.msk [vmem:[%s6 + $0x30] sm:$0xff] %vm99, %v201
  %213 = vst.msk [vmem:[%s6 + $0x38] sm:$0xff] %vm99, %v204
  // Predicated region
  $region18: #{tpu_custom_call.1} parent=0 // pred_check
    _
  $region19: #{tpu_custom_call.1} parent=0 // pred_check_branch
    %215 = sbr.rel (0) target = $region21
  $region20: #{tpu_custom_call.1} parent=0 // pred_region
    _
  $region21: #{tpu_custom_call.1} parent=0 // pred_fallthru
    _
  // Predicated region
  $region22: #{tpu_custom_call.1} parent=0 // pred_check
    _
  $region23: #{tpu_custom_call.1} parent=0 // pred_check_branch
    %217 = sbr.rel (0) target = $region25
  $region24: #{tpu_custom_call.1} parent=0 // pred_region
    _
  $region25: #{tpu_custom_call.1} parent=0 // pred_fallthru
    _
  // Predicated region
  $region26: #{tpu_custom_call.1} parent=0 // pred_check
    _
  $region27: #{tpu_custom_call.1} parent=0 // pred_check_branch
    %219 = sbr.rel (0) target = $region29
  $region28: #{tpu_custom_call.1} parent=0 // pred_region
    _
  $region29: #{tpu_custom_call.1} parent=0 // pred_fallthru
    _
  // Predicated region
  $region30: #{tpu_custom_call.1} parent=0 // pred_check
    _
  $region31: #{tpu_custom_call.1} parent=0 // pred_check_branch
    %221 = sbr.rel (0) target = $region33
  $region32: #{tpu_custom_call.1} parent=0 // pred_region
    _
  $region33: #{tpu_custom_call.1} parent=0 // pred_fallthru
    _
  // Predicated region
  $region34: #{tpu_custom_call.1} parent=0 // pred_check
    _
  $region35: #{tpu_custom_call.1} parent=0 // pred_check_branch
    %223 = sbr.rel (0) target = $region37
  $region36: #{tpu_custom_call.1} parent=0 // pred_region
    _
  $region37: #{tpu_custom_call.1} parent=0 // pred_fallthru
    _
  // Predicated region
  $region38: #{tpu_custom_call.1} parent=0 // pred_check
    _
  $region39: #{tpu_custom_call.1} parent=0 // pred_check_branch
    %225 = sbr.rel (0) target = $region41
  $region40: #{tpu_custom_call.1} parent=0 // pred_region
    _
  $region41: #{tpu_custom_call.1} parent=0 // pred_fallthru
    _

</llo_original>
